<compile_context>
chip_gen: v6e
topology: v6e:2x2x1
jax: 0.10.0
libtpu: 0.0.40
codegen_flags: <defaults>
</compile_context>

<pallas_src>
import functools

import jax
import jax.numpy as jnp
from jax.experimental import pallas as pl
from jax.experimental.pallas import tpu as pltpu


def _round_up(x, m):
    return (x + m - 1) // m * m


def _device_tuning():
    """(tile rows, scoped VMEM bytes) per TPU generation."""
    kind = ""
    try:
        kind = jax.devices()[0].device_kind.lower()
    except Exception:
        pass
    if "v7" in kind or "7x" in kind:
        # v7x: 64 MiB VMEM per TensorCore -> smaller tile, leave headroom.
        return 256, 48 * 1024 * 1024
    # v5e / v6e: 128 MiB physical VMEM.
    return 512, 96 * 1024 * 1024


# ----------------------------- Pallas kernel ------------------------------ #
def _style_loss_kernel(x_ref, wn_ref, norm_ref, mask_ref, mse_ref, idx_ref, *,
                       nt_true):
    # x_ref:    (TILE_NT, K)   synthesis patches, flattened (C, P, P), true K
    # wn_ref:   (K, Ns_pad)    style patches, pre-transposed AND pre-normalized
    #                          (column s == w_s / ||w_s||; zero in padding)
    # norm_ref: (1, Ns_pad)    ||w_s|| (zero in padding)
    # mask_ref: (1, Ns_pad)    additive column mask: 0 valid, -3e38 padding
    t = pl.program_id(0)
    tile_nt, k_true = x_ref.shape

    x = x_ref[...]
    norm = norm_ref[...]

    # Single MXU matmul directly yields the normalized response r[t,s]/||w_s||
    # (== conv2d response / style norm).  The additive mask keeps the argmax
    # off padded style columns with one broadcast VPU add.
    r_norm = jnp.dot(x, wn_ref[...], preferred_element_type=jnp.float32) + mask_ref[...]

    idx = jnp.argmax(r_norm, axis=1).astype(jnp.int32)        # (T,)
    max_val = jnp.max(r_norm, axis=1)                         # (T,) == r[t,idx]/||w_idx||

    # One masked cross-lane reduction to fetch ||w_idx||; the rest is per-row scalar math.
    col = jax.lax.broadcasted_iota(jnp.int32, r_norm.shape, 1)
    sel = col == idx[:, None]
    norm_sel = jnp.sum(jnp.where(sel, norm, 0.0), axis=1)     # (T,) == ||w_idx||

    r_sel = max_val * norm_sel                                # unnormalized r[t, idx]
    nsq_sel = norm_sel * norm_sel                             # ||w_idx||^2
    x_sq = jnp.sum(x * x, axis=1)                             # (T,)

    # mean over (C,P,P):  ||x - w_idx||^2 / K == (||x||^2 - 2 r + ||w||^2) / K
    mse = (x_sq - 2.0 * r_sel + nsq_sel) * (1.0 / k_true)

    # Ragged last tile: zero the contribution of rows past the true Nt
    # (those rows hold unspecified VMEM contents — must stay masked).
    row = jax.lax.broadcasted_iota(jnp.int32, (1, tile_nt), 1) + t * tile_nt
    valid_row = row < nt_true
    mse_ref[...] = jnp.where(valid_row, mse.reshape(1, tile_nt), 0.0)
    idx_ref[...] = idx.reshape(1, tile_nt)


def style_loss_pallas(synth_flat, w_kn, norm_row, col_mask):
    """synth_flat: (Nt, K) f32; w_kn: (K, Ns_pad) pre-normalized; rows: (1, Ns_pad)."""
    nt, k = synth_flat.shape
    _, ns_pad = w_kn.shape
    tile_target, vmem_limit = _device_tuning()

    # Single full-array tile when Nt is small (full-dim exception, no padding at
    # all); otherwise 512/256-row tiles (multiples of 8 and 128) with a ragged,
    # in-kernel-masked last tile.
    tile_nt = nt if nt <= tile_target else tile_target
    num_tiles = pl.cdiv(nt, tile_nt)
    nt_pad = num_tiles * tile_nt

    kernel = functools.partial(_style_loss_kernel, nt_true=nt)

    def build(single_buffer_resident):
        # Resident operands have a constant index_map -> copied into VMEM once.
        # Buffered(1) drops their second (useless) pipeline buffer, halving
        # their VMEM footprint (matters for large Ns*K on v7x's 64 MiB VMEM).
        res_kw = {"pipeline_mode": pl.Buffered(1)} if single_buffer_resident else {}
        return pl.pallas_call(
            kernel,
            grid=(num_tiles,),
            in_specs=[
                pl.BlockSpec((tile_nt, k), lambda i: (i, 0)),            # X streamed per tile
                pl.BlockSpec((k, ns_pad), lambda i: (0, 0), **res_kw),   # W resident
                pl.BlockSpec((1, ns_pad), lambda i: (0, 0), **res_kw),   # ||w|| resident
                pl.BlockSpec((1, ns_pad), lambda i: (0, 0), **res_kw),   # column mask resident
            ],
            out_specs=(
                pl.BlockSpec((1, tile_nt), lambda i: (0, i)),            # per-patch MSE (lane-dense)
                pl.BlockSpec((1, tile_nt), lambda i: (0, i)),            # argmax idx (lane-dense)
            ),
            out_shape=(
                jax.ShapeDtypeStruct((1, nt_pad), jnp.float32),
                jax.ShapeDtypeStruct((1, nt_pad), jnp.int32),
            ),
            compiler_params=pltpu.CompilerParams(
                dimension_semantics=("parallel",),   # tiles independent -> megacore / v7x TCs
                vmem_limit_bytes=vmem_limit,
            ),
        )

    try:
        mse_out, idx_out = build(True)(synth_flat, w_kn, norm_row, col_mask)
        jax.block_until_ready((mse_out, idx_out))
    except Exception:
        # Some jax/Mosaic versions reject buffer_count=1 on the standard
        # pipeline; fall back to default double buffering (same kernel).
        mse_out, idx_out = build(False)(synth_flat, w_kn, norm_row, col_mask)

    loss = jnp.sum(mse_out) / jnp.float32(nt)   # sum of per-patch means / Nt
    idx = idx_out[0, :nt]
    return loss, idx


# ------------------------------ glue (plain JAX) --------------------------- #
def content_patches_sampling(image, patch_size, stride):
    """image: (1, C, H, W) -> (Nt, C, P, P), row-major over (i, j) positions.

    Vectorized im2col: two gathers + one transpose (no Python per-patch loop).
    """
    _, c, h, w = image.shape
    img = image[0]                                              # (C, H, W)
    ii = jnp.arange(0, h - patch_size + 1, stride)
    jj = jnp.arange(0, w - patch_size + 1, stride)
    d = jnp.arange(patch_size)
    rows = ii[:, None] + d[None, :]                             # (nh, P)
    cols = jj[:, None] + d[None, :]                             # (nw, P)
    p1 = jnp.take(img, rows, axis=1)                            # (C, nh, P, W)
    p2 = jnp.take(p1, cols, axis=3)                             # (C, nh, P, nw, P)
    patches = jnp.transpose(p2, (1, 3, 0, 2, 4))                # (nh, nw, C, P, P)
    return patches.reshape(-1, c, patch_size, patch_size)


def style_patches_sampling(image, patch_size, stride):
    """Keep only patches whose center lies OUTSIDE the central half region
    (exact replication of the PyTorch boolean); selection indices are static."""
    _, _, h, w = image.shape
    all_patches = content_patches_sampling(image, patch_size, stride)
    keep, pos = [], 0
    for i in range(0, h - patch_size + 1, stride):
        for j in range(0, w - patch_size + 1, stride):
            cx = i + patch_size / 2
            cy = j + patch_size / 2
            inside = (cx > h / 4) and (cx < h * 3 / 4) and (cy > w / 4) and (cy < w * 3 / 4)
            if not inside:
                keep.append(pos)
            pos += 1
    return all_patches[jnp.asarray(keep, dtype=jnp.int32)]


class StyleLossPallas:
    """JAX/Pallas port of the PyTorch StyleLoss module (forward semantics)."""

    def __init__(self, target, patch_size, mrf_style_stride, mrf_synthesis_stride,
                 gpu_chunk_size=None, device=None):
        # gpu_chunk_size / device are host-memory / placement details with no
        # semantic effect; the kernel streams Nt tiles instead.
        self.patch_size = patch_size
        self.mrf_style_stride = mrf_style_stride
        self.mrf_synthesis_stride = mrf_synthesis_stride
        self.loss = None
        self._set_target(target)

    def _set_target(self, target):
        self.style_patches = style_patches_sampling(
            target, self.patch_size, self.mrf_style_stride)
        ns, c, p, _ = self.style_patches.shape
        k = c * p * p
        self._ns = ns
        self._k = k
        flat = self.style_patches.reshape(ns, k).astype(jnp.float32)
        norm = jnp.sqrt(jnp.sum(flat ** 2, axis=1))
        self.style_patches_norm = norm
        ns_pad = _round_up(ns, 128)
        # Static per module: pre-transposed, pre-NORMALIZED, lane-padded style
        # matrix (true K on the sublane dim, Ns padded to 128 on the lane dim).
        # Note: an all-zero style patch (norm == 0) yields inf/nan here,
        # matching the div-by-zero behaviour of the PyTorch reference.
        w_norm = (flat / norm[:, None]).T                       # (k, ns)
        self._w_kn = jnp.zeros((k, ns_pad), jnp.float32).at[:, :ns].set(w_norm)
        self._norm_row = jnp.zeros((1, ns_pad), jnp.float32).at[0, :ns].set(norm)
        self._col_mask = jnp.full((1, ns_pad), -3e38, jnp.float32).at[0, :ns].set(0.0)
        # For very large style sets (k * ns_pad * 4 bytes beyond ~24 MiB) an
        # inner Ns grid axis with an online running argmax in VMEM scratch would
        # keep W from needing to be fully resident (relevant on v7x).

    def update(self, target):
        self._set_target(target)

    def forward(self, d_in):
        synth = content_patches_sampling(d_in, self.patch_size, self.mrf_synthesis_stride)
        # TODO(synk): im2col is done host-side in plain JAX; an on-chip im2col
        # from a VMEM-resident image tile would cut HBM traffic further.
        nt = synth.shape[0]
        synth_flat = synth.reshape(nt, self._k).astype(jnp.float32)
        loss, idx = style_loss_pallas(synth_flat, self._w_kn,
                                      self._norm_row, self._col_mask)
        self.loss = loss
        self.argmax_idx = idx
        return d_in  # forward returns its input unchanged, like the PyTorch module


# --------------------------------- main ------------------------------------ #
if __name__ == "__main__":
    key = jax.random.PRNGKey(0)
    k_t, k_x = jax.random.split(key)

    B, C, H, W = 1, 4, 16, 16            # batch must be 1 (module squeezes dim 0)
    patch_size, style_stride, synth_stride = 4, 2, 2

    target = jax.random.normal(k_t, (B, C, H, W), dtype=jnp.float32)
    d_in = jax.random.normal(k_x, (B, C, H, W), dtype=jnp.float32)

    mod = StyleLossPallas(target, patch_size, style_stride, synth_stride)
    out = mod.forward(d_in)
    out = jax.block_until_ready(out)
    loss = jax.block_until_ready(mod.loss)
    idx = jax.block_until_ready(mod.argmax_idx)

    # ---- pure-JAX reference: loop-based extraction + direct diff formula ----
    def ref_content(image, p_sz, s):
        _, _, h, w = image.shape
        ps = [image[0, :, i:i + p_sz, j:j + p_sz]
              for i in range(0, h - p_sz + 1, s) for j in range(0, w - p_sz + 1, s)]
        return jnp.stack(ps, 0)

    def ref_style(image, p_sz, s):
        _, _, h, w = image.shape
        ps = []
        for i in range(0, h - p_sz + 1, s):
            for j in range(0, w - p_sz + 1, s):
                cx, cy = i + p_sz / 2, j + p_sz / 2
                inside = (cx > h / 4) and (cx < h * 3 / 4) and (cy > w / 4) and (cy < w * 3 / 4)
                if not inside:
                    ps.append(image[0, :, i:i + p_sz, j:j + p_sz])
        return jnp.stack(ps, 0)

    k_dim = C * patch_size * patch_size
    xf = ref_content(d_in, patch_size, synth_stride).reshape(-1, k_dim).astype(jnp.float32)
    wp = ref_style(target, patch_size, style_stride)
    wf = wp.reshape(-1, k_dim).astype(jnp.float32)
    wnorm = jnp.sqrt(jnp.sum(wf ** 2, axis=1))
    r = (xf @ wf.T) / wnorm[None, :]
    ref_idx = jnp.argmax(r, axis=1).astype(jnp.int32)
    ref_loss = jnp.mean(jnp.mean((xf - wf[ref_idx]) ** 2, axis=1))

    assert mod.style_patches.shape == wp.shape, "style patch count mismatch"
    assert jnp.allclose(mod.style_patches, wp), "vectorized patch extraction mismatch"
    assert jnp.all(ref_idx == idx), "argmax mismatch"
    # norm-expansion identity is exact algebraically; allow small f32 cancellation error
    assert jnp.allclose(loss, ref_loss, rtol=1e-4, atol=1e-4), (loss, ref_loss)

    print("KERNEL_OK")
</pallas_src>

<mosaic_0001>
module attributes {stable_mosaic.version = 11 : i64} {
  func.func @_style_loss_kernel(%arg0: i32, %arg1: memref<49x64xf32, #tpu.memory_space<vmem>>, %arg2: memref<64x128xf32, #tpu.memory_space<vmem>>, %arg3: memref<1x128xf32, #tpu.memory_space<vmem>>, %arg4: memref<1x128xf32, #tpu.memory_space<vmem>>, %arg5: memref<1x49xf32, #tpu.memory_space<vmem>>, %arg6: memref<1x49xi32, #tpu.memory_space<vmem>>) attributes {dimension_semantics = [#tpu.dimension_semantics<parallel>], iteration_bounds = array<i64: 1>, scalar_prefetch = 0 : i64, scratch_operands = 0 : i64, tpu.core_type = #tpu.core_type<tc>, window_params = [{transform_indices = @transform_0, window_bounds = array<i64: 49, 64>}, {pipeline_mode = #tpu.pipeline_mode<synchronous>, transform_indices = @transform_1, window_bounds = array<i64: 64, 128>}, {pipeline_mode = #tpu.pipeline_mode<synchronous>, transform_indices = @transform_2, window_bounds = array<i64: 1, 128>}, {pipeline_mode = #tpu.pipeline_mode<synchronous>, transform_indices = @transform_3, window_bounds = array<i64: 1, 128>}, {transform_indices = @transform_4, window_bounds = array<i64: 1, 49>}, {transform_indices = @transform_5, window_bounds = array<i64: 1, 49>}]} {
    %c0 = arith.constant 0 : index
    %c0_0 = arith.constant 0 : index
    %0 = vector.load %arg1[%c0, %c0_0] : memref<49x64xf32, #tpu.memory_space<vmem>>, vector<49x64xf32>
    %c0_1 = arith.constant 0 : index
    %c0_2 = arith.constant 0 : index
    %1 = vector.load %arg3[%c0_1, %c0_2] : memref<1x128xf32, #tpu.memory_space<vmem>>, vector<1x128xf32>
    %c0_3 = arith.constant 0 : index
    %c0_4 = arith.constant 0 : index
    %2 = vector.load %arg2[%c0_3, %c0_4] : memref<64x128xf32, #tpu.memory_space<vmem>>, vector<64x128xf32>
    %cst = arith.constant dense<0.000000e+00> : vector<49x128xf32>
    %3 = tpu.matmul %0, %2, %cst {dimension_numbers = #tpu.dot_dimension_numbers<[1], [0], [0], [1], [0, 0, 1, 1], [], []>} : vector<49x64xf32>, vector<64x128xf32>, vector<49x128xf32> -> vector<49x128xf32>
    %c0_5 = arith.constant 0 : index
    %c0_6 = arith.constant 0 : index
    %4 = vector.load %arg4[%c0_5, %c0_6] : memref<1x128xf32, #tpu.memory_space<vmem>>, vector<1x128xf32>
    %5 = vector.broadcast %4 : vector<1x128xf32> to vector<49x128xf32>
    %6 = arith.addf %3, %5 : vector<49x128xf32>
    %7 = tpu.reduce_index %6 {axis = 1 : i32, kind = #tpu.reduction_kind<arg_max>} : vector<49x128xf32> -> vector<49xi32>
    %cst_7 = arith.constant dense<0xFF800000> : vector<49xf32>
    %8 = vector.multi_reduction <maximumf>, %6, %cst_7 [1] : vector<49x128xf32> to vector<49xf32>
    %9 = tpu.iota {dimensions = array<i32: 1>} : vector<49x128xi32>
    %10 = vector.shape_cast %7 : vector<49xi32> to vector<49x1xi32>
    %11 = vector.broadcast %10 : vector<49x1xi32> to vector<49x128xi32>
    %12 = arith.cmpi eq, %9, %11 : vector<49x128xi32>
    %cst_8 = arith.constant 0.000000e+00 : f32
    %13 = vector.shape_cast %1 : vector<1x128xf32> to vector<1x128xf32>
    %14 = vector.broadcast %13 : vector<1x128xf32> to vector<49x128xf32>
    %15 = vector.broadcast %cst_8 : f32 to vector<49x128xf32>
    %16 = arith.select %12, %14, %15 : vector<49x128xi1>, vector<49x128xf32>
    %cst_9 = arith.constant dense<0.000000e+00> : vector<49xf32>
    %17 = vector.multi_reduction <add>, %16, %cst_9 [1] : vector<49x128xf32> to vector<49xf32>
    %18 = arith.mulf %8, %17 : vector<49xf32>
    %19 = arith.mulf %17, %17 : vector<49xf32>
    %20 = arith.mulf %0, %0 : vector<49x64xf32>
    %cst_10 = arith.constant dense<0.000000e+00> : vector<49xf32>
    %21 = vector.multi_reduction <add>, %20, %cst_10 [1] : vector<49x64xf32> to vector<49xf32>
    %cst_11 = arith.constant 2.000000e+00 : f32
    %22 = vector.broadcast %cst_11 : f32 to vector<49xf32>
    %23 = arith.mulf %22, %18 : vector<49xf32>
    %24 = arith.subf %21, %23 : vector<49xf32>
    %25 = arith.addf %24, %19 : vector<49xf32>
    %cst_12 = arith.constant 1.562500e-02 : f32
    %26 = vector.broadcast %cst_12 : f32 to vector<49xf32>
    %27 = arith.mulf %25, %26 : vector<49xf32>
    %28 = tpu.iota {dimensions = array<i32: 1>} : vector<1x49xi32>
    %c49_i32 = arith.constant 49 : i32
    %29 = arith.muli %arg0, %c49_i32 : i32
    %30 = vector.broadcast %29 : i32 to vector<1x49xi32>
    %31 = arith.addi %28, %30 : vector<1x49xi32>
    %c49_i32_13 = arith.constant 49 : i32
    %32 = vector.broadcast %c49_i32_13 : i32 to vector<1x49xi32>
    %33 = arith.cmpi slt, %31, %32 : vector<1x49xi32>
    %34 = vector.shape_cast %27 : vector<49xf32> to vector<1x49xf32>
    %cst_14 = arith.constant 0.000000e+00 : f32
    %35 = vector.broadcast %cst_14 : f32 to vector<1x49xf32>
    %36 = arith.select %33, %34, %35 : vector<1x49xi1>, vector<1x49xf32>
    %c0_15 = arith.constant 0 : index
    %c0_16 = arith.constant 0 : index
    %37 = vector.load %arg5[%c0_15, %c0_16] : memref<1x49xf32, #tpu.memory_space<vmem>>, vector<1x49xf32>
    tpu.vector_store %arg5[%c0_15, %c0_16], %36 {strides = array<i32>} : memref<1x49xf32, #tpu.memory_space<vmem>>, vector<1x49xf32>,
    %38 = vector.shape_cast %7 : vector<49xi32> to vector<1x49xi32>
    %c0_17 = arith.constant 0 : index
    %c0_18 = arith.constant 0 : index
    %39 = vector.load %arg6[%c0_17, %c0_18] : memref<1x49xi32, #tpu.memory_space<vmem>>, vector<1x49xi32>
    tpu.vector_store %arg6[%c0_17, %c0_18], %38 {strides = array<i32>} : memref<1x49xi32, #tpu.memory_space<vmem>>, vector<1x49xi32>,
    return
  }
  func.func @transform_0(%arg0: i32) -> (i32, i32) {
    %c0_i32 = arith.constant 0 : i32
    %c0_i32_0 = arith.constant 0 : i32
    return %arg0, %c0_i32 : i32, i32
  }
  func.func @transform_1(%arg0: i32) -> (i32, i32) {
    %c0_i32 = arith.constant 0 : i32
    %c0_i32_0 = arith.constant 0 : i32
    %c0_i32_1 = arith.constant 0 : i32
    return %c0_i32, %c0_i32_0 : i32, i32
  }
  func.func @transform_2(%arg0: i32) -> (i32, i32) {
    %c0_i32 = arith.constant 0 : i32
    %c0_i32_0 = arith.constant 0 : i32
    %c0_i32_1 = arith.constant 0 : i32
    return %c0_i32, %c0_i32_0 : i32, i32
  }
  func.func @transform_3(%arg0: i32) -> (i32, i32) {
    %c0_i32 = arith.constant 0 : i32
    %c0_i32_0 = arith.constant 0 : i32
    %c0_i32_1 = arith.constant 0 : i32
    return %c0_i32, %c0_i32_0 : i32, i32
  }
  func.func @transform_4(%arg0: i32) -> (i32, i32) {
    %c0_i32 = arith.constant 0 : i32
    %c0_i32_0 = arith.constant 0 : i32
    return %c0_i32, %arg0 : i32, i32
  }
  func.func @transform_5(%arg0: i32) -> (i32, i32) {
    %c0_i32 = arith.constant 0 : i32
    %c0_i32_0 = arith.constant 0 : i32
    return %c0_i32, %arg0 : i32, i32
  }
}

module attributes {stable_mosaic.version = 11 : i64} {
  func.func @_style_loss_kernel(%arg0: i32, %arg1: memref<49x64xf32, #tpu.memory_space<vmem>>, %arg2: memref<64x128xf32, #tpu.memory_space<vmem>>, %arg3: memref<1x128xf32, #tpu.memory_space<vmem>>, %arg4: memref<1x128xf32, #tpu.memory_space<vmem>>, %arg5: memref<1x49xf32, #tpu.memory_space<vmem>>, %arg6: memref<1x49xi32, #tpu.memory_space<vmem>>) attributes {dimension_semantics = [#tpu.dimension_semantics<parallel>], iteration_bounds = array<i64: 1>, scalar_prefetch = 0 : i64, scratch_operands = 0 : i64, tpu.core_type = #tpu.core_type<tc>, window_params = [{transform_indices = @transform_0, window_bounds = array<i64: 49, 64>}, {pipeline_mode = #tpu.pipeline_mode<synchronous>, transform_indices = @transform_1, window_bounds = array<i64: 64, 128>}, {pipeline_mode = #tpu.pipeline_mode<synchronous>, transform_indices = @transform_2, window_bounds = array<i64: 1, 128>}, {pipeline_mode = #tpu.pipeline_mode<synchronous>, transform_indices = @transform_3, window_bounds = array<i64: 1, 128>}, {transform_indices = @transform_4, window_bounds = array<i64: 1, 49>}, {transform_indices = @transform_5, window_bounds = array<i64: 1, 49>}]} {
    %c0 = arith.constant 0 : index
    %c0_0 = arith.constant 0 : index
    %0 = vector.load %arg1[%c0, %c0_0] : memref<49x64xf32, #tpu.memory_space<vmem>>, vector<49x64xf32>
    %c0_1 = arith.constant 0 : index
    %c0_2 = arith.constant 0 : index
    %1 = vector.load %arg3[%c0_1, %c0_2] : memref<1x128xf32, #tpu.memory_space<vmem>>, vector<1x128xf32>
    %c0_3 = arith.constant 0 : index
    %c0_4 = arith.constant 0 : index
    %2 = vector.load %arg2[%c0_3, %c0_4] : memref<64x128xf32, #tpu.memory_space<vmem>>, vector<64x128xf32>
    %cst = arith.constant dense<0.000000e+00> : vector<49x128xf32>
    %3 = tpu.matmul %0, %2, %cst {dimension_numbers = #tpu.dot_dimension_numbers<[1], [0], [0], [1], [0, 0, 1, 1], [], []>} : vector<49x64xf32>, vector<64x128xf32>, vector<49x128xf32> -> vector<49x128xf32>
    %c0_5 = arith.constant 0 : index
    %c0_6 = arith.constant 0 : index
    %4 = vector.load %arg4[%c0_5, %c0_6] : memref<1x128xf32, #tpu.memory_space<vmem>>, vector<1x128xf32>
    %5 = vector.broadcast %4 : vector<1x128xf32> to vector<49x128xf32>
    %6 = arith.addf %3, %5 : vector<49x128xf32>
    %7 = tpu.reduce_index %6 {axis = 1 : i32, kind = #tpu.reduction_kind<arg_max>} : vector<49x128xf32> -> vector<49xi32>
    %cst_7 = arith.constant dense<0xFF800000> : vector<49xf32>
    %8 = vector.multi_reduction <maximumf>, %6, %cst_7 [1] : vector<49x128xf32> to vector<49xf32>
    %9 = tpu.iota {dimensions = array<i32: 1>} : vector<49x128xi32>
    %10 = vector.shape_cast %7 : vector<49xi32> to vector<49x1xi32>
    %11 = vector.broadcast %10 : vector<49x1xi32> to vector<49x128xi32>
    %12 = arith.cmpi eq, %9, %11 : vector<49x128xi32>
    %cst_8 = arith.constant 0.000000e+00 : f32
    %13 = vector.shape_cast %1 : vector<1x128xf32> to vector<1x128xf32>
    %14 = vector.broadcast %13 : vector<1x128xf32> to vector<49x128xf32>
    %15 = vector.broadcast %cst_8 : f32 to vector<49x128xf32>
    %16 = arith.select %12, %14, %15 : vector<49x128xi1>, vector<49x128xf32>
    %cst_9 = arith.constant dense<0.000000e+00> : vector<49xf32>
    %17 = vector.multi_reduction <add>, %16, %cst_9 [1] : vector<49x128xf32> to vector<49xf32>
    %18 = arith.mulf %8, %17 : vector<49xf32>
    %19 = arith.mulf %17, %17 : vector<49xf32>
    %20 = arith.mulf %0, %0 : vector<49x64xf32>
    %cst_10 = arith.constant dense<0.000000e+00> : vector<49xf32>
    %21 = vector.multi_reduction <add>, %20, %cst_10 [1] : vector<49x64xf32> to vector<49xf32>
    %cst_11 = arith.constant 2.000000e+00 : f32
    %22 = vector.broadcast %cst_11 : f32 to vector<49xf32>
    %23 = arith.mulf %22, %18 : vector<49xf32>
    %24 = arith.subf %21, %23 : vector<49xf32>
    %25 = arith.addf %24, %19 : vector<49xf32>
    %cst_12 = arith.constant 1.562500e-02 : f32
    %26 = vector.broadcast %cst_12 : f32 to vector<49xf32>
    %27 = arith.mulf %25, %26 : vector<49xf32>
    %28 = tpu.iota {dimensions = array<i32: 1>} : vector<1x49xi32>
    %c49_i32 = arith.constant 49 : i32
    %29 = arith.muli %arg0, %c49_i32 : i32
    %30 = vector.broadcast %29 : i32 to vector<1x49xi32>
    %31 = arith.addi %28, %30 : vector<1x49xi32>
    %c49_i32_13 = arith.constant 49 : i32
    %32 = vector.broadcast %c49_i32_13 : i32 to vector<1x49xi32>
    %33 = arith.cmpi slt, %31, %32 : vector<1x49xi32>
    %34 = vector.shape_cast %27 : vector<49xf32> to vector<1x49xf32>
    %cst_14 = arith.constant 0.000000e+00 : f32
    %35 = vector.broadcast %cst_14 : f32 to vector<1x49xf32>
    %36 = arith.select %33, %34, %35 : vector<1x49xi1>, vector<1x49xf32>
    %c0_15 = arith.constant 0 : index
    %c0_16 = arith.constant 0 : index
    %37 = vector.load %arg5[%c0_15, %c0_16] : memref<1x49xf32, #tpu.memory_space<vmem>>, vector<1x49xf32>
    tpu.vector_store %arg5[%c0_15, %c0_16], %36 {strides = array<i32>} : memref<1x49xf32, #tpu.memory_space<vmem>>, vector<1x49xf32>,
    %38 = vector.shape_cast %7 : vector<49xi32> to vector<1x49xi32>
    %c0_17 = arith.constant 0 : index
    %c0_18 = arith.constant 0 : index
    %39 = vector.load %arg6[%c0_17, %c0_18] : memref<1x49xi32, #tpu.memory_space<vmem>>, vector<1x49xi32>
    tpu.vector_store %arg6[%c0_17, %c0_18], %38 {strides = array<i32>} : memref<1x49xi32, #tpu.memory_space<vmem>>, vector<1x49xi32>,
    return
  }
  func.func @transform_0(%arg0: i32) -> (i32, i32) {
    %c0_i32 = arith.constant 0 : i32
    %c0_i32_0 = arith.constant 0 : i32
    return %arg0, %c0_i32 : i32, i32
  }
  func.func @transform_1(%arg0: i32) -> (i32, i32) {
    %c0_i32 = arith.constant 0 : i32
    %c0_i32_0 = arith.constant 0 : i32
    %c0_i32_1 = arith.constant 0 : i32
    return %c0_i32, %c0_i32_0 : i32, i32
  }
  func.func @transform_2(%arg0: i32) -> (i32, i32) {
    %c0_i32 = arith.constant 0 : i32
    %c0_i32_0 = arith.constant 0 : i32
    %c0_i32_1 = arith.constant 0 : i32
    return %c0_i32, %c0_i32_0 : i32, i32
  }
  func.func @transform_3(%arg0: i32) -> (i32, i32) {
    %c0_i32 = arith.constant 0 : i32
    %c0_i32_0 = arith.constant 0 : i32
    %c0_i32_1 = arith.constant 0 : i32
    return %c0_i32, %c0_i32_0 : i32, i32
  }
  func.func @transform_4(%arg0: i32) -> (i32, i32) {
    %c0_i32 = arith.constant 0 : i32
    %c0_i32_0 = arith.constant 0 : i32
    return %c0_i32, %arg0 : i32, i32
  }
  func.func @transform_5(%arg0: i32) -> (i32, i32) {
    %c0_i32 = arith.constant 0 : i32
    %c0_i32_0 = arith.constant 0 : i32
    return %c0_i32, %arg0 : i32, i32
  }
}

</mosaic_0001>

<llo_original>
// kernel: tpu_custom_call.1
$region0: #{tpu_custom_call.1}
  #allocation0 [shape = 'u32[]', space=smem, size = 0x4, offset = 0x4, fixed_abs, tag = 'smem constant byte address 0x4 - core index']
  #allocation1 [shape = 'u32[144,128]{1,0:T(1,128)}', space=vmem, size = 0x12000, scoped, tag = 'internal scratch']
  %s0 = inlined_call_operand.hbm [shape: f32[49,64], index: 0, kind: input, shape index: {}]
  %s1 = inlined_call_operand.hbm [shape: f32[64,128], index: 1, kind: input, shape index: {}]
  %s2 = inlined_call_operand.vmem [shape: f32[1,128], index: 2, kind: input, shape index: {}]
  %s3 = inlined_call_operand.vmem [shape: f32[1,128], index: 3, kind: input, shape index: {}]
  %s4 = inlined_call_operand.hbm [shape: f32[1,49], index: 4, kind: output, shape index: {0}]
  %s5 = inlined_call_operand.hbm [shape: s32[1,49], index: 5, kind: output, shape index: {1}]
  %6 = xla_tuple %s4, %s5
  %s7 = sld [smem:[#allocation0]]
  $region42: #{tpu_custom_call.1} parent=0
    _
  %s9 = ssub.s32 1, %s7
  %s10 = scalar_select 0, %s9, %s7
  $region1: #{tpu_custom_call.1} parent=0
    #allocation2 [shape = 'u8[28672]{0}', space=vmem, size = 0x7000, scoped, tag = 'input window, operand 0, single buffered']
    #allocation3 [shape = 's32[1]{0}', space=sflag, size = 0x4, scoped, tag = 'scoped memory for tpu_custom_call.1']
    #allocation4 [shape = 's32[1]{0}', space=sflag, size = 0x4, scoped, tag = 'scoped memory for tpu_custom_call.1']
    #allocation5 [shape = 'u8[32768]{0}', space=vmem, size = 0x8000, scoped, tag = 'input window, operand 1, single buffered']
    #allocation6 [shape = 's32[1]{0}', space=sflag, size = 0x4, scoped, tag = 'scoped memory for tpu_custom_call.1']
    #allocation7 [shape = 'u8[512]{0}', space=vmem, size = 0x400, scoped, tag = 'output window, operand 0, single buffered']
    #allocation8 [shape = 'u8[512]{0}', space=vmem, size = 0x400, scoped, tag = 'output window, operand 1, single buffered']
    #allocation9 [shape = 's32[1]{0}', space=sflag, size = 0x4, scoped, tag = 'scoped memory for tpu_custom_call.1']
    %11 = vsyncpa [#allocation3], 0
    %12 = vsyncpa [#allocation6], 0
    %13 = vsyncpa [#allocation4], 0
    %14 = vsyncpa [#allocation9], 0
    // Predicated region
    $region2: #{tpu_custom_call.1} parent=1 // pred_check
      _
    $region3: #{tpu_custom_call.1} parent=1 // pred_check_branch
      %16 = sbr.rel (0) target = $region5
    $region4: #{tpu_custom_call.1} parent=1 // pred_region
      %s18 = ssub.s32 896, 896
      %19 = vsyncadd [#allocation3], %s18
      %s20 = sshll.u32 [#allocation2], 4
      %s21 = int_to_ptr.vmem [resolvable:$true] %s20
      %26 = dma.hbm_to_vmem [thread:$0]  %s0, 896, %s21, [#allocation3], 128, 128, 8
    $region5: #{tpu_custom_call.1} parent=1 // pred_fallthru
      _
    // Predicated region
    $region6: #{tpu_custom_call.1} parent=1 // pred_check
      _
    $region7: #{tpu_custom_call.1} parent=1 // pred_check_branch
      %28 = sbr.rel (0) target = $region9
    $region8: #{tpu_custom_call.1} parent=1 // pred_region
      %s30 = ssub.s32 1024, 1024
      %31 = vsyncadd [#allocation6], %s30
      %s32 = sshll.u32 [#allocation5], 4
      %s33 = int_to_ptr.vmem [resolvable:$true] %s32
      %38 = dma.hbm_to_vmem [thread:$0]  %s1, 1024, %s33, [#allocation6], 128, 128, 8
    $region9: #{tpu_custom_call.1} parent=1 // pred_fallthru
      _
    // Predicated region
    $region10: #{tpu_custom_call.1} parent=1 // pred_check
      _
    $region11: #{tpu_custom_call.1} parent=1 // pred_check_branch
      %40 = sbr.rel (0) target = $region13
    $region12: #{tpu_custom_call.1} parent=1 // pred_region
      _
    $region13: #{tpu_custom_call.1} parent=1 // pred_fallthru
      _
    // Predicated region
    $region14: #{tpu_custom_call.1} parent=1 // pred_check
      _
    $region15: #{tpu_custom_call.1} parent=1 // pred_check_branch
      %42 = sbr.rel (0) target = $region17
    $region16: #{tpu_custom_call.1} parent=1 // pred_region
      _
    $region17: #{tpu_custom_call.1} parent=1 // pred_fallthru
      _
    // Predicated region
    $region18: #{tpu_custom_call.1} parent=1 // pred_check
      _
    $region19: #{tpu_custom_call.1} parent=1 // pred_check_branch
      %44 = sbr.rel (0) target = $region21
    $region20: #{tpu_custom_call.1} parent=1 // pred_region
      %45 = dma.done [#allocation3], 896
    $region21: #{tpu_custom_call.1} parent=1 // pred_fallthru
      _
    // Predicated region
    $region22: #{tpu_custom_call.1} parent=1 // pred_check
      _
    $region23: #{tpu_custom_call.1} parent=1 // pred_check_branch
      %47 = sbr.rel (0) target = $region25
    $region24: #{tpu_custom_call.1} parent=1 // pred_region
      %48 = dma.done [#allocation6], 1024
    $region25: #{tpu_custom_call.1} parent=1 // pred_fallthru
      _
    %v49 = vld [vmem:[#allocation2] sm:$0xff]
    %v50 = vld [vmem:[#allocation2 + $0x8] sm:$0xff]
    %v51 = vld [vmem:[#allocation2 + $0x10] sm:$0xff]
    %v52 = vld [vmem:[#allocation2 + $0x18] sm:$0xff]
    %v53 = vld [vmem:[#allocation2 + $0x20] sm:$0xff]
    %v54 = vld [vmem:[#allocation2 + $0x28] sm:$0xff]
    %v55 = vld [vmem:[#allocation2 + $0x30] sm:$0x1]
    %v56 = vld [vmem:[%s2] sm:$0x1]
    %v57 = vld [vmem:[#allocation5] sm:$0xff]
    %v58 = vld [vmem:[#allocation5 + $0x8] sm:$0xff]
    %v59 = vld [vmem:[#allocation5 + $0x10] sm:$0xff]
    %v60 = vld [vmem:[#allocation5 + $0x18] sm:$0xff]
    %v61 = vld [vmem:[#allocation5 + $0x20] sm:$0xff]
    %v62 = vld [vmem:[#allocation5 + $0x28] sm:$0xff]
    %v63 = vld [vmem:[#allocation5 + $0x30] sm:$0xff]
    %v64 = vld [vmem:[#allocation5 + $0x38] sm:$0xff]
    %v65 = vld [vmem:[%s3] sm:$0x1]
    %v67 = vlaneseq
    %v68 = vshrl.u32 %v67, 7
    %v69 = vsub.s32 0, %v68
    %v70 = vrot.slane %v65, %v69
    %vm72 = vcmask 523264
    %v74 = vsel %vm72, %v49, 0
    %v77 = vsel %vm72, %v50, 0
    %v80 = vsel %vm72, %v51, 0
    %v83 = vsel %vm72, %v52, 0
    %v86 = vsel %vm72, %v53, 0
    %v89 = vsel %vm72, %v54, 0
    %v92 = vsel %vm72, %v55, 0
    %94 = vmatprep.subr.mxu0 0.0
    %95 = vmatpush1.msra.mxu0 0.0
    %96 = vmatprep.subr.mxu0 0.0
    %97 = vmatpush1.msra.mxu0 0.0
    %98 = vmatprep.subr.mxu0 0.0
    %99 = vmatpush1.msra.mxu0 0.0
    %100 = vmatprep.subr.mxu0 0.0
    %101 = vmatpush1.msra.mxu0 0.0
    %102 = vmatprep.subr.mxu0 0.0
    %103 = vmatpush1.msra.mxu0 0.0
    %104 = vmatprep.subr.mxu0 0.0
    %105 = vmatpush1.msra.mxu0 0.0
    %106 = vmatprep.subr.mxu0 0.0
    %107 = vmatpush1.msra.mxu0 0.0
    %108 = vmatprep.subr.mxu0 0.0
    %109 = vmatpush1.msra.mxu0 0.0
    %110 = vmatprep.subr.mxu0 0.0
    %111 = vmatpush1.msra.mxu0 %v64
    %112 = vmatprep.subr.mxu0 0.0
    %113 = vmatpush1.msra.mxu0 %v63
    %114 = vmatprep.subr.mxu0 0.0
    %115 = vmatpush1.msra.mxu0 %v62
    %116 = vmatprep.subr.mxu0 0.0
    %117 = vmatpush1.msra.mxu0 %v61
    %118 = vmatprep.subr.mxu0 0.0
    %119 = vmatpush1.msra.mxu0 %v60
    %120 = vmatprep.subr.mxu0 0.0
    %121 = vmatpush1.msra.mxu0 %v59
    %122 = vmatprep.subr.mxu0 0.0
    %123 = vmatpush1.msra.mxu0 %v58
    %124 = vmatprep.subr.mxu0 0.0
    %125 = vmatpush1.msra.mxu0 %v57
    %126 = vmatprep.subr.mxu0 0.0
    %127 = vmatpush2.msra.mxu0 0.0
    %128 = vmatprep.subr.mxu0 0.0
    %129 = vmatpush2.msra.mxu0 0.0
    %130 = vmatprep.subr.mxu0 0.0
    %131 = vmatpush2.msra.mxu0 0.0
    %132 = vmatprep.subr.mxu0 0.0
    %133 = vmatpush2.msra.mxu0 0.0
    %134 = vmatprep.subr.mxu0 0.0
    %135 = vmatpush2.msra.mxu0 0.0
    %136 = vmatprep.subr.mxu0 0.0
    %137 = vmatpush2.msra.mxu0 0.0
    %138 = vmatprep.subr.mxu0 0.0
    %139 = vmatpush2.msra.mxu0 0.0
    %140 = vmatprep.subr.mxu0 0.0
    %141 = vmatpush2.msra.mxu0 0.0
    %142 = vmatprep.subr.mxu0 0.0
    %143 = vmatpush2.msra.mxu0 0.0
    %144 = vmatprep.subr.mxu0 0.0
    %145 = vmatpush2.msra.mxu0 0.0
    %146 = vmatprep.subr.mxu0 0.0
    %147 = vmatpush2.msra.mxu0 0.0
    %148 = vmatprep.subr.mxu0 0.0
    %149 = vmatpush2.msra.mxu0 0.0
    %150 = vmatprep.subr.mxu0 0.0
    %151 = vmatpush2.msra.mxu0 0.0
    %152 = vmatprep.subr.mxu0 0.0
    %153 = vmatpush2.msra.mxu0 0.0
    %154 = vmatprep.subr.mxu0 0.0
    %155 = vmatpush2.msra.mxu0 0.0
    %156 = vmatprep.subr.mxu0 0.0
    %157 = vmatpush2.msra.mxu0 0.0
    %158 = vmatprep.mubr.f32.mxu0 0.0
    %159 = vmatmul.mubr.f32.gmra.mxu0 %v74
    %v160 = vpop.f32.mrf.mxu0
    %v161 = vadd.f32 %v70, %v160
    %v162 = vpop.f32.mrf.mxu0
    %163 = vmatprep.mubr.f32.mxu0 0.0
    %164 = vmatmul.mubr.f32.gmra.mxu0 %v77
    %v165 = vpop.f32.mrf.mxu0
    %v166 = vadd.f32 %v70, %v165
    %v167 = vpop.f32.mrf.mxu0
    %168 = vmatprep.mubr.f32.mxu0 0.0
    %169 = vmatmul.mubr.f32.gmra.mxu0 %v80
    %v170 = vpop.f32.mrf.mxu0
    %v171 = vadd.f32 %v70, %v170
    %v172 = vpop.f32.mrf.mxu0
    %173 = vmatprep.mubr.f32.mxu0 0.0
    %174 = vmatmul.mubr.f32.gmra.mxu0 %v83
    %v175 = vpop.f32.mrf.mxu0
    %v176 = vadd.f32 %v70, %v175
    %v177 = vpop.f32.mrf.mxu0
    %178 = vmatprep.mubr.f32.mxu0 0.0
    %179 = vmatmul.mubr.f32.gmra.mxu0 %v86
    %v180 = vpop.f32.mrf.mxu0
    %v181 = vadd.f32 %v70, %v180
    %v182 = vpop.f32.mrf.mxu0
    %183 = vmatprep.mubr.f32.mxu0 0.0
    %184 = vmatmul.mubr.f32.gmra.mxu0 %v89
    %v185 = vpop.f32.mrf.mxu0
    %v186 = vadd.f32 %v70, %v185
    %v187 = vpop.f32.mrf.mxu0
    %188 = vmatprep.mubr.f32.mxu0 0.0
    %189 = vmatmul.mubr.f32.gmra.mxu0 %v92
    %v190 = vpop.f32.mrf.mxu0
    %v191 = vadd.f32 %v70, %v190
    %v192 = vpop.f32.mrf.mxu0
    %193 = vdwg.mxu0
    %194 = vmax.index.xlane.f32.xlu0 %v161
    %v195 = vpop.xlane.xlu0 %194
    %196 = vmax.index.xlane.f32.xlu0 %v166
    %v197 = vpop.xlane.xlu0 %196
    %198 = vmax.index.xlane.f32.xlu0 %v171
    %v199 = vpop.xlane.xlu0 %198
    %200 = vmax.index.xlane.f32.xlu0 %v176
    %v201 = vpop.xlane.xlu0 %200
    %202 = vmax.index.xlane.f32.xlu0 %v181
    %v203 = vpop.xlane.xlu0 %202
    %204 = vmax.index.xlane.f32.xlu0 %v186
    %v205 = vpop.xlane.xlu0 %204
    %vm206 = vcmask 1040384
    %v207 = vsel %vm206, %v191, -inf
    %208 = vmax.index.xlane.f32.xlu0 %v207
    %v209 = vpop.xlane.xlu0 %208
    %210 = vmax.xlane.f32.xlu0 %v161
    %v211 = vpop.xlane.xlu0 %210
    %212 = vmax.xlane.f32.xlu0 %v166
    %v213 = vpop.xlane.xlu0 %212
    %214 = vmax.xlane.f32.xlu0 %v171
    %v215 = vpop.xlane.xlu0 %214
    %216 = vmax.xlane.f32.xlu0 %v176
    %v217 = vpop.xlane.xlu0 %216
    %218 = vmax.xlane.f32.xlu0 %v181
    %v219 = vpop.xlane.xlu0 %218
    %220 = vmax.xlane.f32.xlu0 %v186
    %v221 = vpop.xlane.xlu0 %220
    %222 = vmax.xlane.f32.xlu0 %v207
    %v223 = vpop.xlane.xlu0 %222
    %v224 = vlaneseq
    %v225 = vand.u32 %v224, 127
    %vm226 = vcmp.eq.s32.totalorder %v225, %v195
    %vm227 = vcmp.eq.s32.totalorder %v225, %v197
    %vm228 = vcmp.eq.s32.totalorder %v225, %v199
    %vm229 = vcmp.eq.s32.totalorder %v225, %v201
    %vm230 = vcmp.eq.s32.totalorder %v225, %v203
    %vm231 = vcmp.eq.s32.totalorder %v225, %v205
    %vm232 = vcmp.eq.s32.totalorder %v225, %v209
    %v234 = vlaneseq
    %v235 = vshrl.u32 %v234, 7
    %v236 = vsub.s32 0, %v235
    %v237 = vrot.slane %v56, %v236
    %v239 = vsel %vm226, %v237, 0.0
    %v240 = vsel %vm227, %v237, 0.0
    %v241 = vsel %vm228, %v237, 0.0
    %v242 = vsel %vm229, %v237, 0.0
    %v243 = vsel %vm230, %v237, 0.0
    %v244 = vsel %vm231, %v237, 0.0
    %v245 = vsel %vm232, %v237, 0.0
    %246 = vadd.xlane.f32.xlu0 %v239
    %v247 = vpop.xlane.xlu0 %246
    %248 = vadd.xlane.f32.xlu0 %v240
    %v249 = vpop.xlane.xlu0 %248
    %250 = vadd.xlane.f32.xlu0 %v241
    %v251 = vpop.xlane.xlu0 %250
    %252 = vadd.xlane.f32.xlu0 %v242
    %v253 = vpop.xlane.xlu0 %252
    %254 = vadd.xlane.f32.xlu0 %v243
    %v255 = vpop.xlane.xlu0 %254
    %256 = vadd.xlane.f32.xlu0 %v244
    %v257 = vpop.xlane.xlu0 %256
    %v258 = vsel %vm206, %v245, 0.0
    %259 = vadd.xlane.f32.xlu0 %v258
    %v260 = vpop.xlane.xlu0 %259
    %v261 = vmul.f32 %v211, %v247
    %v262 = vmul.f32 %v213, %v249
    %v263 = vmul.f32 %v215, %v251
    %v264 = vmul.f32 %v217, %v253
    %v265 = vmul.f32 %v219, %v255
    %v266 = vmul.f32 %v221, %v257
    %v267 = vmul.f32 %v223, %v260
    %v268 = vmul.f32 %v247, %v247
    %v269 = vmul.f32 %v249, %v249
    %v270 = vmul.f32 %v251, %v251
    %v271 = vmul.f32 %v253, %v253
    %v272 = vmul.f32 %v255, %v255
    %v273 = vmul.f32 %v257, %v257
    %v274 = vmul.f32 %v260, %v260
    %v275 = vmul.f32 %v49, %v49
    %v276 = vmul.f32 %v50, %v50
    %v277 = vmul.f32 %v51, %v51
    %v278 = vmul.f32 %v52, %v52
    %v279 = vmul.f32 %v53, %v53
    %v280 = vmul.f32 %v54, %v54
    %v281 = vmul.f32 %v55, %v55
    %v282 = vsel %vm72, %v275, 0.0
    %283 = vadd.xlane.f32.xlu0 %v282
    %v284 = vpop.xlane.xlu0 %283
    %v285 = vsel %vm72, %v276, 0.0
    %286 = vadd.xlane.f32.xlu0 %v285
    %v287 = vpop.xlane.xlu0 %286
    %v288 = vsel %vm72, %v277, 0.0
    %289 = vadd.xlane.f32.xlu0 %v288
    %v290 = vpop.xlane.xlu0 %289
    %v291 = vsel %vm72, %v278, 0.0
    %292 = vadd.xlane.f32.xlu0 %v291
    %v293 = vpop.xlane.xlu0 %292
    %v294 = vsel %vm72, %v279, 0.0
    %295 = vadd.xlane.f32.xlu0 %v294
    %v296 = vpop.xlane.xlu0 %295
    %v297 = vsel %vm72, %v280, 0.0
    %298 = vadd.xlane.f32.xlu0 %v297
    %v299 = vpop.xlane.xlu0 %298
    %vm300 = vcmask 516096
    %v301 = vsel %vm300, %v281, 0.0
    %302 = vadd.xlane.f32.xlu0 %v301
    %v303 = vpop.xlane.xlu0 %302
    %v304 = vmul.f32 %v261, 2.0
    %v305 = vmul.f32 %v262, 2.0
    %v306 = vmul.f32 %v263, 2.0
    %v307 = vmul.f32 %v264, 2.0
    %v308 = vmul.f32 %v265, 2.0
    %v309 = vmul.f32 %v266, 2.0
    %v310 = vmul.f32 %v267, 2.0
    %v311 = vsub.f32 %v284, %v304
    %v312 = vsub.f32 %v287, %v305
    %v313 = vsub.f32 %v290, %v306
    %v314 = vsub.f32 %v293, %v307
    %v315 = vsub.f32 %v296, %v308
    %v316 = vsub.f32 %v299, %v309
    %v317 = vsub.f32 %v303, %v310
    %v318 = vadd.f32 %v311, %v268
    %v319 = vadd.f32 %v312, %v269
    %v320 = vadd.f32 %v313, %v270
    %v321 = vadd.f32 %v314, %v271
    %v322 = vadd.f32 %v315, %v272
    %v323 = vadd.f32 %v316, %v273
    %v324 = vadd.f32 %v317, %v274
    %v325 = vmul.f32 %v318, 0.015625
    %v326 = vmul.f32 %v319, 0.015625
    %v327 = vmul.f32 %v320, 0.015625
    %v328 = vmul.f32 %v321, 0.015625
    %v329 = vmul.f32 %v322, 0.015625
    %v330 = vmul.f32 %v323, 0.015625
    %v331 = vmul.f32 %v324, 0.015625
    %s332 = smul.u32 0, 49
    %v333 = vstv %s332
    %v334 = vadd.s32 %v225, %v333
    %vm335 = vcmp.lt.s32.totalorder %v334, 49
    %v343 = vlaneseq
    %v344 = vshrl.u32 %v343, 7
    %v345 = vsub.s32 %v225, %v344
    %v346 = vrot.slane %v325, %v345
    %v347 = vadd.s32 %v225, 4294967288
    %v348 = vlaneseq
    %v349 = vshrl.u32 %v348, 7
    %v350 = vsub.s32 %v347, %v349
    %v351 = vrot.slane %v326, %v350
    %vm352 = vcmask 130112
    %v353 = vsel %vm352, %v351, %v346
    %v354 = vadd.s32 %v225, 4294967280
    %v355 = vlaneseq
    %v356 = vshrl.u32 %v355, 7
    %v357 = vsub.s32 %v354, %v356
    %v358 = vrot.slane %v327, %v357
    %vm359 = vcmask 195712
    %v360 = vsel %vm359, %v358, %v353
    %v361 = vadd.s32 %v225, 4294967272
    %v362 = vlaneseq
    %v363 = vshrl.u32 %v362, 7
    %v364 = vsub.s32 %v361, %v363
    %v365 = vrot.slane %v328, %v364
    %vm366 = vcmask 261312
    %v367 = vsel %vm366, %v365, %v360
    %v368 = vadd.s32 %v225, 4294967264
    %v369 = vlaneseq
    %v370 = vshrl.u32 %v369, 7
    %v371 = vsub.s32 %v368, %v370
    %v372 = vrot.slane %v329, %v371
    %vm373 = vcmask 326912
    %v374 = vsel %vm373, %v372, %v367
    %v375 = vadd.s32 %v225, 4294967256
    %v376 = vlaneseq
    %v377 = vshrl.u32 %v376, 7
    %v378 = vsub.s32 %v375, %v377
    %v379 = vrot.slane %v330, %v378
    %vm380 = vcmask 392512
    %v381 = vsel %vm380, %v379, %v374
    %v382 = vadd.s32 %v225, 4294967248
    %v383 = vlaneseq
    %v384 = vshrl.u32 %v383, 7
    %v385 = vsub.s32 %v382, %v384
    %v386 = vrot.slane %v331, %v385
    %vm387 = vcmask 458112
    %v388 = vsel %vm387, %v386, %v381
    %v390 = vsel %vm335, %v388, 0.0
    %vm391 = vcmask 393216
    %392 = vst.msk [vmem:[#allocation7] sm:$0x1] %vm391, %v390
    %v393 = vlaneseq
    %v394 = vshrl.u32 %v393, 7
    %v395 = vsub.s32 %v225, %v394
    %v396 = vrot.slane %v195, %v395
    %v397 = vlaneseq
    %v398 = vshrl.u32 %v397, 7
    %v399 = vsub.s32 %v347, %v398
    %v400 = vrot.slane %v197, %v399
    %v401 = vsel %vm352, %v400, %v396
    %v402 = vlaneseq
    %v403 = vshrl.u32 %v402, 7
    %v404 = vsub.s32 %v354, %v403
    %v405 = vrot.slane %v199, %v404
    %v406 = vsel %vm359, %v405, %v401
    %v407 = vlaneseq
    %v408 = vshrl.u32 %v407, 7
    %v409 = vsub.s32 %v361, %v408
    %v410 = vrot.slane %v201, %v409
    %v411 = vsel %vm366, %v410, %v406
    %v412 = vlaneseq
    %v413 = vshrl.u32 %v412, 7
    %v414 = vsub.s32 %v368, %v413
    %v415 = vrot.slane %v203, %v414
    %v416 = vsel %vm373, %v415, %v411
    %v417 = vlaneseq
    %v418 = vshrl.u32 %v417, 7
    %v419 = vsub.s32 %v375, %v418
    %v420 = vrot.slane %v205, %v419
    %v421 = vsel %vm380, %v420, %v416
    %v422 = vlaneseq
    %v423 = vshrl.u32 %v422, 7
    %v424 = vsub.s32 %v382, %v423
    %v425 = vrot.slane %v209, %v424
    %v426 = vsel %vm387, %v425, %v421
    %427 = vst.msk [vmem:[#allocation8] sm:$0x1] %vm391, %v426
    // Predicated region
    $region26: #{tpu_custom_call.1} parent=1 // pred_check
      _
    $region27: #{tpu_custom_call.1} parent=1 // pred_check_branch
      %429 = sbr.rel (0) target = $region29
    $region28: #{tpu_custom_call.1} parent=1 // pred_region
      %s431 = ssub.s32 16, 16
      %432 = vsyncadd [#allocation4], %s431
      %s434 = sshll.u32 [#allocation7], 4
      %s435 = int_to_ptr.vmem [resolvable:$true] %s434
      %437 = dma.vmem_to_hbm [thread:$0]  %s435, 16, %s4, [#allocation4]
    $region29: #{tpu_custom_call.1} parent=1 // pred_fallthru
      _
    // Predicated region
    $region30: #{tpu_custom_call.1} parent=1 // pred_check
      _
    $region31: #{tpu_custom_call.1} parent=1 // pred_check_branch
      %439 = sbr.rel (0) target = $region33
    $region32: #{tpu_custom_call.1} parent=1 // pred_region
      %s441 = ssub.s32 16, 16
      %442 = vsyncadd [#allocation9], %s441
      %s444 = sshll.u32 [#allocation8], 4
      %s445 = int_to_ptr.vmem [resolvable:$true] %s444
      %447 = dma.vmem_to_hbm [thread:$0]  %s445, 16, %s5, [#allocation9]
    $region33: #{tpu_custom_call.1} parent=1 // pred_fallthru
      _
    // Predicated region
    $region34: #{tpu_custom_call.1} parent=1 // pred_check
      _
    $region35: #{tpu_custom_call.1} parent=1 // pred_check_branch
      %449 = sbr.rel (0) target = $region37
    $region36: #{tpu_custom_call.1} parent=1 // pred_region
      %450 = dma.done [#allocation4], 16
    $region37: #{tpu_custom_call.1} parent=1 // pred_fallthru
      _
    // Predicated region
    $region38: #{tpu_custom_call.1} parent=1 // pred_check
      _
    $region39: #{tpu_custom_call.1} parent=1 // pred_check_branch
      %452 = sbr.rel (0) target = $region41
    $region40: #{tpu_custom_call.1} parent=1 // pred_region
      %453 = dma.done [#allocation9], 16
    $region41: #{tpu_custom_call.1} parent=1 // pred_fallthru
      _
    %454 = vsyncpa [#allocation3], 1
    %455 = vsyncpa [#allocation6], 1
    %456 = vsyncpa [#allocation4], 1
    %457 = vsyncpa [#allocation9], 1

// kernel: tpu_custom_call.1
$region0: #{tpu_custom_call.1}
  #allocation0 [shape = 'u32[]', space=smem, size = 0x4, offset = 0x4, fixed_abs, tag = 'smem constant byte address 0x4 - core index']
  #allocation1 [shape = 'u32[144,128]{1,0:T(1,128)}', space=vmem, size = 0x12000, scoped, tag = 'internal scratch']
  %s0 = inlined_call_operand.hbm [shape: f32[49,64], index: 0, kind: input, shape index: {}]
  %s1 = inlined_call_operand.hbm [shape: f32[64,128], index: 1, kind: input, shape index: {}]
  %s2 = inlined_call_operand.vmem [shape: f32[1,128], index: 2, kind: input, shape index: {}]
  %s3 = inlined_call_operand.vmem [shape: f32[1,128], index: 3, kind: input, shape index: {}]
  %s4 = inlined_call_operand.hbm [shape: f32[1,49], index: 4, kind: output, shape index: {0}]
  %s5 = inlined_call_operand.hbm [shape: s32[1,49], index: 5, kind: output, shape index: {1}]
  %6 = xla_tuple %s4, %s5
  %s7 = sld [smem:[#allocation0]]
  $region42: #{tpu_custom_call.1} parent=0
    _
  %s9 = ssub.s32 1, %s7
  %s10 = scalar_select 0, %s9, %s7
  $region1: #{tpu_custom_call.1} parent=0
    #allocation2 [shape = 'u8[28672]{0}', space=vmem, size = 0x7000, scoped, tag = 'input window, operand 0, single buffered']
    #allocation3 [shape = 's32[1]{0}', space=sflag, size = 0x4, scoped, tag = 'scoped memory for tpu_custom_call.1']
    #allocation4 [shape = 's32[1]{0}', space=sflag, size = 0x4, scoped, tag = 'scoped memory for tpu_custom_call.1']
    #allocation5 [shape = 'u8[32768]{0}', space=vmem, size = 0x8000, scoped, tag = 'input window, operand 1, single buffered']
    #allocation6 [shape = 's32[1]{0}', space=sflag, size = 0x4, scoped, tag = 'scoped memory for tpu_custom_call.1']
    #allocation7 [shape = 'u8[512]{0}', space=vmem, size = 0x400, scoped, tag = 'output window, operand 0, single buffered']
    #allocation8 [shape = 'u8[512]{0}', space=vmem, size = 0x400, scoped, tag = 'output window, operand 1, single buffered']
    #allocation9 [shape = 's32[1]{0}', space=sflag, size = 0x4, scoped, tag = 'scoped memory for tpu_custom_call.1']
    %11 = vsyncpa [#allocation3], 0
    %12 = vsyncpa [#allocation6], 0
    %13 = vsyncpa [#allocation4], 0
    %14 = vsyncpa [#allocation9], 0
    // Predicated region
    $region2: #{tpu_custom_call.1} parent=1 // pred_check
      _
    $region3: #{tpu_custom_call.1} parent=1 // pred_check_branch
      %16 = sbr.rel (0) target = $region5
    $region4: #{tpu_custom_call.1} parent=1 // pred_region
      %s18 = ssub.s32 896, 896
      %19 = vsyncadd [#allocation3], %s18
      %s20 = sshll.u32 [#allocation2], 4
      %s21 = int_to_ptr.vmem [resolvable:$true] %s20
      %26 = dma.hbm_to_vmem [thread:$0]  %s0, 896, %s21, [#allocation3], 128, 128, 8
    $region5: #{tpu_custom_call.1} parent=1 // pred_fallthru
      _
    // Predicated region
    $region6: #{tpu_custom_call.1} parent=1 // pred_check
      _
    $region7: #{tpu_custom_call.1} parent=1 // pred_check_branch
      %28 = sbr.rel (0) target = $region9
    $region8: #{tpu_custom_call.1} parent=1 // pred_region
      %s30 = ssub.s32 1024, 1024
      %31 = vsyncadd [#allocation6], %s30
      %s32 = sshll.u32 [#allocation5], 4
      %s33 = int_to_ptr.vmem [resolvable:$true] %s32
      %38 = dma.hbm_to_vmem [thread:$0]  %s1, 1024, %s33, [#allocation6], 128, 128, 8
    $region9: #{tpu_custom_call.1} parent=1 // pred_fallthru
      _
    // Predicated region
    $region10: #{tpu_custom_call.1} parent=1 // pred_check
      _
    $region11: #{tpu_custom_call.1} parent=1 // pred_check_branch
      %40 = sbr.rel (0) target = $region13
    $region12: #{tpu_custom_call.1} parent=1 // pred_region
      _
    $region13: #{tpu_custom_call.1} parent=1 // pred_fallthru
      _
    // Predicated region
    $region14: #{tpu_custom_call.1} parent=1 // pred_check
      _
    $region15: #{tpu_custom_call.1} parent=1 // pred_check_branch
      %42 = sbr.rel (0) target = $region17
    $region16: #{tpu_custom_call.1} parent=1 // pred_region
      _
    $region17: #{tpu_custom_call.1} parent=1 // pred_fallthru
      _
    // Predicated region
    $region18: #{tpu_custom_call.1} parent=1 // pred_check
      _
    $region19: #{tpu_custom_call.1} parent=1 // pred_check_branch
      %44 = sbr.rel (0) target = $region21
    $region20: #{tpu_custom_call.1} parent=1 // pred_region
      %45 = dma.done [#allocation3], 896
    $region21: #{tpu_custom_call.1} parent=1 // pred_fallthru
      _
    // Predicated region
    $region22: #{tpu_custom_call.1} parent=1 // pred_check
      _
    $region23: #{tpu_custom_call.1} parent=1 // pred_check_branch
      %47 = sbr.rel (0) target = $region25
    $region24: #{tpu_custom_call.1} parent=1 // pred_region
      %48 = dma.done [#allocation6], 1024
    $region25: #{tpu_custom_call.1} parent=1 // pred_fallthru
      _
    %v49 = vld [vmem:[#allocation2] sm:$0xff]
    %v50 = vld [vmem:[#allocation2 + $0x8] sm:$0xff]
    %v51 = vld [vmem:[#allocation2 + $0x10] sm:$0xff]
    %v52 = vld [vmem:[#allocation2 + $0x18] sm:$0xff]
    %v53 = vld [vmem:[#allocation2 + $0x20] sm:$0xff]
    %v54 = vld [vmem:[#allocation2 + $0x28] sm:$0xff]
    %v55 = vld [vmem:[#allocation2 + $0x30] sm:$0x1]
    %v56 = vld [vmem:[%s2] sm:$0x1]
    %v57 = vld [vmem:[#allocation5] sm:$0xff]
    %v58 = vld [vmem:[#allocation5 + $0x8] sm:$0xff]
    %v59 = vld [vmem:[#allocation5 + $0x10] sm:$0xff]
    %v60 = vld [vmem:[#allocation5 + $0x18] sm:$0xff]
    %v61 = vld [vmem:[#allocation5 + $0x20] sm:$0xff]
    %v62 = vld [vmem:[#allocation5 + $0x28] sm:$0xff]
    %v63 = vld [vmem:[#allocation5 + $0x30] sm:$0xff]
    %v64 = vld [vmem:[#allocation5 + $0x38] sm:$0xff]
    %v65 = vld [vmem:[%s3] sm:$0x1]
    %v67 = vlaneseq
    %v68 = vshrl.u32 %v67, 7
    %v69 = vsub.s32 0, %v68
    %v70 = vrot.slane %v65, %v69
    %vm72 = vcmask 523264
    %v74 = vsel %vm72, %v49, 0
    %v77 = vsel %vm72, %v50, 0
    %v80 = vsel %vm72, %v51, 0
    %v83 = vsel %vm72, %v52, 0
    %v86 = vsel %vm72, %v53, 0
    %v89 = vsel %vm72, %v54, 0
    %v92 = vsel %vm72, %v55, 0
    %94 = vmatprep.subr.mxu0 0.0
    %95 = vmatpush1.msra.mxu0 0.0
    %96 = vmatprep.subr.mxu0 0.0
    %97 = vmatpush1.msra.mxu0 0.0
    %98 = vmatprep.subr.mxu0 0.0
    %99 = vmatpush1.msra.mxu0 0.0
    %100 = vmatprep.subr.mxu0 0.0
    %101 = vmatpush1.msra.mxu0 0.0
    %102 = vmatprep.subr.mxu0 0.0
    %103 = vmatpush1.msra.mxu0 0.0
    %104 = vmatprep.subr.mxu0 0.0
    %105 = vmatpush1.msra.mxu0 0.0
    %106 = vmatprep.subr.mxu0 0.0
    %107 = vmatpush1.msra.mxu0 0.0
    %108 = vmatprep.subr.mxu0 0.0
    %109 = vmatpush1.msra.mxu0 0.0
    %110 = vmatprep.subr.mxu0 0.0
    %111 = vmatpush1.msra.mxu0 %v64
    %112 = vmatprep.subr.mxu0 0.0
    %113 = vmatpush1.msra.mxu0 %v63
    %114 = vmatprep.subr.mxu0 0.0
    %115 = vmatpush1.msra.mxu0 %v62
    %116 = vmatprep.subr.mxu0 0.0
    %117 = vmatpush1.msra.mxu0 %v61
    %118 = vmatprep.subr.mxu0 0.0
    %119 = vmatpush1.msra.mxu0 %v60
    %120 = vmatprep.subr.mxu0 0.0
    %121 = vmatpush1.msra.mxu0 %v59
    %122 = vmatprep.subr.mxu0 0.0
    %123 = vmatpush1.msra.mxu0 %v58
    %124 = vmatprep.subr.mxu0 0.0
    %125 = vmatpush1.msra.mxu0 %v57
    %126 = vmatprep.subr.mxu0 0.0
    %127 = vmatpush2.msra.mxu0 0.0
    %128 = vmatprep.subr.mxu0 0.0
    %129 = vmatpush2.msra.mxu0 0.0
    %130 = vmatprep.subr.mxu0 0.0
    %131 = vmatpush2.msra.mxu0 0.0
    %132 = vmatprep.subr.mxu0 0.0
    %133 = vmatpush2.msra.mxu0 0.0
    %134 = vmatprep.subr.mxu0 0.0
    %135 = vmatpush2.msra.mxu0 0.0
    %136 = vmatprep.subr.mxu0 0.0
    %137 = vmatpush2.msra.mxu0 0.0
    %138 = vmatprep.subr.mxu0 0.0
    %139 = vmatpush2.msra.mxu0 0.0
    %140 = vmatprep.subr.mxu0 0.0
    %141 = vmatpush2.msra.mxu0 0.0
    %142 = vmatprep.subr.mxu0 0.0
    %143 = vmatpush2.msra.mxu0 0.0
    %144 = vmatprep.subr.mxu0 0.0
    %145 = vmatpush2.msra.mxu0 0.0
    %146 = vmatprep.subr.mxu0 0.0
    %147 = vmatpush2.msra.mxu0 0.0
    %148 = vmatprep.subr.mxu0 0.0
    %149 = vmatpush2.msra.mxu0 0.0
    %150 = vmatprep.subr.mxu0 0.0
    %151 = vmatpush2.msra.mxu0 0.0
    %152 = vmatprep.subr.mxu0 0.0
    %153 = vmatpush2.msra.mxu0 0.0
    %154 = vmatprep.subr.mxu0 0.0
    %155 = vmatpush2.msra.mxu0 0.0
    %156 = vmatprep.subr.mxu0 0.0
    %157 = vmatpush2.msra.mxu0 0.0
    %158 = vmatprep.mubr.f32.mxu0 0.0
    %159 = vmatmul.mubr.f32.gmra.mxu0 %v74
    %v160 = vpop.f32.mrf.mxu0
    %v161 = vadd.f32 %v70, %v160
    %v162 = vpop.f32.mrf.mxu0
    %163 = vmatprep.mubr.f32.mxu0 0.0
    %164 = vmatmul.mubr.f32.gmra.mxu0 %v77
    %v165 = vpop.f32.mrf.mxu0
    %v166 = vadd.f32 %v70, %v165
    %v167 = vpop.f32.mrf.mxu0
    %168 = vmatprep.mubr.f32.mxu0 0.0
    %169 = vmatmul.mubr.f32.gmra.mxu0 %v80
    %v170 = vpop.f32.mrf.mxu0
    %v171 = vadd.f32 %v70, %v170
    %v172 = vpop.f32.mrf.mxu0
    %173 = vmatprep.mubr.f32.mxu0 0.0
    %174 = vmatmul.mubr.f32.gmra.mxu0 %v83
    %v175 = vpop.f32.mrf.mxu0
    %v176 = vadd.f32 %v70, %v175
    %v177 = vpop.f32.mrf.mxu0
    %178 = vmatprep.mubr.f32.mxu0 0.0
    %179 = vmatmul.mubr.f32.gmra.mxu0 %v86
    %v180 = vpop.f32.mrf.mxu0
    %v181 = vadd.f32 %v70, %v180
    %v182 = vpop.f32.mrf.mxu0
    %183 = vmatprep.mubr.f32.mxu0 0.0
    %184 = vmatmul.mubr.f32.gmra.mxu0 %v89
    %v185 = vpop.f32.mrf.mxu0
    %v186 = vadd.f32 %v70, %v185
    %v187 = vpop.f32.mrf.mxu0
    %188 = vmatprep.mubr.f32.mxu0 0.0
    %189 = vmatmul.mubr.f32.gmra.mxu0 %v92
    %v190 = vpop.f32.mrf.mxu0
    %v191 = vadd.f32 %v70, %v190
    %v192 = vpop.f32.mrf.mxu0
    %193 = vdwg.mxu0
    %194 = vmax.index.xlane.f32.xlu0 %v161
    %v195 = vpop.xlane.xlu0 %194
    %196 = vmax.index.xlane.f32.xlu0 %v166
    %v197 = vpop.xlane.xlu0 %196
    %198 = vmax.index.xlane.f32.xlu0 %v171
    %v199 = vpop.xlane.xlu0 %198
    %200 = vmax.index.xlane.f32.xlu0 %v176
    %v201 = vpop.xlane.xlu0 %200
    %202 = vmax.index.xlane.f32.xlu0 %v181
    %v203 = vpop.xlane.xlu0 %202
    %204 = vmax.index.xlane.f32.xlu0 %v186
    %v205 = vpop.xlane.xlu0 %204
    %vm206 = vcmask 1040384
    %v207 = vsel %vm206, %v191, -inf
    %208 = vmax.index.xlane.f32.xlu0 %v207
    %v209 = vpop.xlane.xlu0 %208
    %210 = vmax.xlane.f32.xlu0 %v161
    %v211 = vpop.xlane.xlu0 %210
    %212 = vmax.xlane.f32.xlu0 %v166
    %v213 = vpop.xlane.xlu0 %212
    %214 = vmax.xlane.f32.xlu0 %v171
    %v215 = vpop.xlane.xlu0 %214
    %216 = vmax.xlane.f32.xlu0 %v176
    %v217 = vpop.xlane.xlu0 %216
    %218 = vmax.xlane.f32.xlu0 %v181
    %v219 = vpop.xlane.xlu0 %218
    %220 = vmax.xlane.f32.xlu0 %v186
    %v221 = vpop.xlane.xlu0 %220
    %222 = vmax.xlane.f32.xlu0 %v207
    %v223 = vpop.xlane.xlu0 %222
    %v224 = vlaneseq
    %v225 = vand.u32 %v224, 127
    %vm226 = vcmp.eq.s32.totalorder %v225, %v195
    %vm227 = vcmp.eq.s32.totalorder %v225, %v197
    %vm228 = vcmp.eq.s32.totalorder %v225, %v199
    %vm229 = vcmp.eq.s32.totalorder %v225, %v201
    %vm230 = vcmp.eq.s32.totalorder %v225, %v203
    %vm231 = vcmp.eq.s32.totalorder %v225, %v205
    %vm232 = vcmp.eq.s32.totalorder %v225, %v209
    %v234 = vlaneseq
    %v235 = vshrl.u32 %v234, 7
    %v236 = vsub.s32 0, %v235
    %v237 = vrot.slane %v56, %v236
    %v239 = vsel %vm226, %v237, 0.0
    %v240 = vsel %vm227, %v237, 0.0
    %v241 = vsel %vm228, %v237, 0.0
    %v242 = vsel %vm229, %v237, 0.0
    %v243 = vsel %vm230, %v237, 0.0
    %v244 = vsel %vm231, %v237, 0.0
    %v245 = vsel %vm232, %v237, 0.0
    %246 = vadd.xlane.f32.xlu0 %v239
    %v247 = vpop.xlane.xlu0 %246
    %248 = vadd.xlane.f32.xlu0 %v240
    %v249 = vpop.xlane.xlu0 %248
    %250 = vadd.xlane.f32.xlu0 %v241
    %v251 = vpop.xlane.xlu0 %250
    %252 = vadd.xlane.f32.xlu0 %v242
    %v253 = vpop.xlane.xlu0 %252
    %254 = vadd.xlane.f32.xlu0 %v243
    %v255 = vpop.xlane.xlu0 %254
    %256 = vadd.xlane.f32.xlu0 %v244
    %v257 = vpop.xlane.xlu0 %256
    %v258 = vsel %vm206, %v245, 0.0
    %259 = vadd.xlane.f32.xlu0 %v258
    %v260 = vpop.xlane.xlu0 %259
    %v261 = vmul.f32 %v211, %v247
    %v262 = vmul.f32 %v213, %v249
    %v263 = vmul.f32 %v215, %v251
    %v264 = vmul.f32 %v217, %v253
    %v265 = vmul.f32 %v219, %v255
    %v266 = vmul.f32 %v221, %v257
    %v267 = vmul.f32 %v223, %v260
    %v268 = vmul.f32 %v247, %v247
    %v269 = vmul.f32 %v249, %v249
    %v270 = vmul.f32 %v251, %v251
    %v271 = vmul.f32 %v253, %v253
    %v272 = vmul.f32 %v255, %v255
    %v273 = vmul.f32 %v257, %v257
    %v274 = vmul.f32 %v260, %v260
    %v275 = vmul.f32 %v49, %v49
    %v276 = vmul.f32 %v50, %v50
    %v277 = vmul.f32 %v51, %v51
    %v278 = vmul.f32 %v52, %v52
    %v279 = vmul.f32 %v53, %v53
    %v280 = vmul.f32 %v54, %v54
    %v281 = vmul.f32 %v55, %v55
    %v282 = vsel %vm72, %v275, 0.0
    %283 = vadd.xlane.f32.xlu0 %v282
    %v284 = vpop.xlane.xlu0 %283
    %v285 = vsel %vm72, %v276, 0.0
    %286 = vadd.xlane.f32.xlu0 %v285
    %v287 = vpop.xlane.xlu0 %286
    %v288 = vsel %vm72, %v277, 0.0
    %289 = vadd.xlane.f32.xlu0 %v288
    %v290 = vpop.xlane.xlu0 %289
    %v291 = vsel %vm72, %v278, 0.0
    %292 = vadd.xlane.f32.xlu0 %v291
    %v293 = vpop.xlane.xlu0 %292
    %v294 = vsel %vm72, %v279, 0.0
    %295 = vadd.xlane.f32.xlu0 %v294
    %v296 = vpop.xlane.xlu0 %295
    %v297 = vsel %vm72, %v280, 0.0
    %298 = vadd.xlane.f32.xlu0 %v297
    %v299 = vpop.xlane.xlu0 %298
    %vm300 = vcmask 516096
    %v301 = vsel %vm300, %v281, 0.0
    %302 = vadd.xlane.f32.xlu0 %v301
    %v303 = vpop.xlane.xlu0 %302
    %v304 = vmul.f32 %v261, 2.0
    %v305 = vmul.f32 %v262, 2.0
    %v306 = vmul.f32 %v263, 2.0
    %v307 = vmul.f32 %v264, 2.0
    %v308 = vmul.f32 %v265, 2.0
    %v309 = vmul.f32 %v266, 2.0
    %v310 = vmul.f32 %v267, 2.0
    %v311 = vsub.f32 %v284, %v304
    %v312 = vsub.f32 %v287, %v305
    %v313 = vsub.f32 %v290, %v306
    %v314 = vsub.f32 %v293, %v307
    %v315 = vsub.f32 %v296, %v308
    %v316 = vsub.f32 %v299, %v309
    %v317 = vsub.f32 %v303, %v310
    %v318 = vadd.f32 %v311, %v268
    %v319 = vadd.f32 %v312, %v269
    %v320 = vadd.f32 %v313, %v270
    %v321 = vadd.f32 %v314, %v271
    %v322 = vadd.f32 %v315, %v272
    %v323 = vadd.f32 %v316, %v273
    %v324 = vadd.f32 %v317, %v274
    %v325 = vmul.f32 %v318, 0.015625
    %v326 = vmul.f32 %v319, 0.015625
    %v327 = vmul.f32 %v320, 0.015625
    %v328 = vmul.f32 %v321, 0.015625
    %v329 = vmul.f32 %v322, 0.015625
    %v330 = vmul.f32 %v323, 0.015625
    %v331 = vmul.f32 %v324, 0.015625
    %s332 = smul.u32 0, 49
    %v333 = vstv %s332
    %v334 = vadd.s32 %v225, %v333
    %vm335 = vcmp.lt.s32.totalorder %v334, 49
    %v343 = vlaneseq
    %v344 = vshrl.u32 %v343, 7
    %v345 = vsub.s32 %v225, %v344
    %v346 = vrot.slane %v325, %v345
    %v347 = vadd.s32 %v225, 4294967288
    %v348 = vlaneseq
    %v349 = vshrl.u32 %v348, 7
    %v350 = vsub.s32 %v347, %v349
    %v351 = vrot.slane %v326, %v350
    %vm352 = vcmask 130112
    %v353 = vsel %vm352, %v351, %v346
    %v354 = vadd.s32 %v225, 4294967280
    %v355 = vlaneseq
    %v356 = vshrl.u32 %v355, 7
    %v357 = vsub.s32 %v354, %v356
    %v358 = vrot.slane %v327, %v357
    %vm359 = vcmask 195712
    %v360 = vsel %vm359, %v358, %v353
    %v361 = vadd.s32 %v225, 4294967272
    %v362 = vlaneseq
    %v363 = vshrl.u32 %v362, 7
    %v364 = vsub.s32 %v361, %v363
    %v365 = vrot.slane %v328, %v364
    %vm366 = vcmask 261312
    %v367 = vsel %vm366, %v365, %v360
    %v368 = vadd.s32 %v225, 4294967264
    %v369 = vlaneseq
    %v370 = vshrl.u32 %v369, 7
    %v371 = vsub.s32 %v368, %v370
    %v372 = vrot.slane %v329, %v371
    %vm373 = vcmask 326912
    %v374 = vsel %vm373, %v372, %v367
    %v375 = vadd.s32 %v225, 4294967256
    %v376 = vlaneseq
    %v377 = vshrl.u32 %v376, 7
    %v378 = vsub.s32 %v375, %v377
    %v379 = vrot.slane %v330, %v378
    %vm380 = vcmask 392512
    %v381 = vsel %vm380, %v379, %v374
    %v382 = vadd.s32 %v225, 4294967248
    %v383 = vlaneseq
    %v384 = vshrl.u32 %v383, 7
    %v385 = vsub.s32 %v382, %v384
    %v386 = vrot.slane %v331, %v385
    %vm387 = vcmask 458112
    %v388 = vsel %vm387, %v386, %v381
    %v390 = vsel %vm335, %v388, 0.0
    %vm391 = vcmask 393216
    %392 = vst.msk [vmem:[#allocation7] sm:$0x1] %vm391, %v390
    %v393 = vlaneseq
    %v394 = vshrl.u32 %v393, 7
    %v395 = vsub.s32 %v225, %v394
    %v396 = vrot.slane %v195, %v395
    %v397 = vlaneseq
    %v398 = vshrl.u32 %v397, 7
    %v399 = vsub.s32 %v347, %v398
    %v400 = vrot.slane %v197, %v399
    %v401 = vsel %vm352, %v400, %v396
    %v402 = vlaneseq
    %v403 = vshrl.u32 %v402, 7
    %v404 = vsub.s32 %v354, %v403
    %v405 = vrot.slane %v199, %v404
    %v406 = vsel %vm359, %v405, %v401
    %v407 = vlaneseq
    %v408 = vshrl.u32 %v407, 7
    %v409 = vsub.s32 %v361, %v408
    %v410 = vrot.slane %v201, %v409
    %v411 = vsel %vm366, %v410, %v406
    %v412 = vlaneseq
    %v413 = vshrl.u32 %v412, 7
    %v414 = vsub.s32 %v368, %v413
    %v415 = vrot.slane %v203, %v414
    %v416 = vsel %vm373, %v415, %v411
    %v417 = vlaneseq
    %v418 = vshrl.u32 %v417, 7
    %v419 = vsub.s32 %v375, %v418
    %v420 = vrot.slane %v205, %v419
    %v421 = vsel %vm380, %v420, %v416
    %v422 = vlaneseq
    %v423 = vshrl.u32 %v422, 7
    %v424 = vsub.s32 %v382, %v423
    %v425 = vrot.slane %v209, %v424
    %v426 = vsel %vm387, %v425, %v421
    %427 = vst.msk [vmem:[#allocation8] sm:$0x1] %vm391, %v426
    // Predicated region
    $region26: #{tpu_custom_call.1} parent=1 // pred_check
      _
    $region27: #{tpu_custom_call.1} parent=1 // pred_check_branch
      %429 = sbr.rel (0) target = $region29
    $region28: #{tpu_custom_call.1} parent=1 // pred_region
      %s431 = ssub.s32 16, 16
      %432 = vsyncadd [#allocation4], %s431
      %s434 = sshll.u32 [#allocation7], 4
      %s435 = int_to_ptr.vmem [resolvable:$true] %s434
      %437 = dma.vmem_to_hbm [thread:$0]  %s435, 16, %s4, [#allocation4]
    $region29: #{tpu_custom_call.1} parent=1 // pred_fallthru
      _
    // Predicated region
    $region30: #{tpu_custom_call.1} parent=1 // pred_check
      _
    $region31: #{tpu_custom_call.1} parent=1 // pred_check_branch
      %439 = sbr.rel (0) target = $region33
    $region32: #{tpu_custom_call.1} parent=1 // pred_region
      %s441 = ssub.s32 16, 16
      %442 = vsyncadd [#allocation9], %s441
      %s444 = sshll.u32 [#allocation8], 4
      %s445 = int_to_ptr.vmem [resolvable:$true] %s444
      %447 = dma.vmem_to_hbm [thread:$0]  %s445, 16, %s5, [#allocation9]
    $region33: #{tpu_custom_call.1} parent=1 // pred_fallthru
      _
    // Predicated region
    $region34: #{tpu_custom_call.1} parent=1 // pred_check
      _
    $region35: #{tpu_custom_call.1} parent=1 // pred_check_branch
      %449 = sbr.rel (0) target = $region37
    $region36: #{tpu_custom_call.1} parent=1 // pred_region
      %450 = dma.done [#allocation4], 16
    $region37: #{tpu_custom_call.1} parent=1 // pred_fallthru
      _
    // Predicated region
    $region38: #{tpu_custom_call.1} parent=1 // pred_check
      _
    $region39: #{tpu_custom_call.1} parent=1 // pred_check_branch
      %452 = sbr.rel (0) target = $region41
    $region40: #{tpu_custom_call.1} parent=1 // pred_region
      %453 = dma.done [#allocation9], 16
    $region41: #{tpu_custom_call.1} parent=1 // pred_fallthru
      _
    %454 = vsyncpa [#allocation3], 1
    %455 = vsyncpa [#allocation6], 1
    %456 = vsyncpa [#allocation4], 1
    %457 = vsyncpa [#allocation9], 1

</llo_original>
